<compile_context>
chip_gen: v5e
topology: v5e:2x2
jax: 0.10.0
libtpu: 0.0.40
codegen_flags: <defaults>
</compile_context>

<pallas_src>
import math

import jax
import jax.numpy as jnp
import numpy as np
from jax import lax
from jax.experimental import pallas as pl
from jax.experimental.pallas import tpu as pltpu

# ----------------------------- config (small) -------------------------------
B = 2        # batch
S = 8        # sequence length
H = 32       # hidden_size
NH = 4       # num_attention_heads
HD = H // NH # attention_head_size
I = 64       # intermediate_size
BS = B * S
LN_EPS = 1e-12
SCALE = 1.0 / math.sqrt(HD)
NEG_BIG = -1e9           # cross-batch key kill value (exp underflows to 0)

# consts array layout: (8 + BS, 128) f32 -- every slice starts at lane 0.
_R_BQKV = 0   # lanes [0, 3H): fused q/k/v bias
_R_BO = 1     # lanes [0, H)
_R_BI = 2     # lanes [0, I)
_R_BO2 = 3
_R_G1 = 4
_R_B1 = 5
_R_G2 = 6
_R_B2 = 7
_R_BLK = 8    # rows [8, 8+BS), lanes [0, BS): cross-batch -1e9 block mask
C_ROWS = 8 + BS


def _gelu(x):
    # exact GELU: x * 0.5 * (1 + erf(x / sqrt(2)))
    return x * 0.5 * (1.0 + lax.erf(x * (1.0 / math.sqrt(2.0))))


def _layernorm(x, gamma, beta):
    u = jnp.mean(x, axis=-1, keepdims=True)
    d = x - u
    s = jnp.mean(d * d, axis=-1, keepdims=True)
    return d * lax.rsqrt(s + LN_EPS) * gamma + beta


def bert_layer_kernel(x_ref, mask_ref, slab_ref, wo2_ref, consts_ref, out_ref):
    xf = x_ref[...]                                    # (BS, H) f32
    cv = consts_ref[...]                               # (C_ROWS, 128) f32
    bqkv = cv[_R_BQKV:_R_BQKV + 1, :3 * H]
    bo = cv[_R_BO:_R_BO + 1, :H]
    bi = cv[_R_BI:_R_BI + 1, :I]
    bo2 = cv[_R_BO2:_R_BO2 + 1, :H]
    g1 = cv[_R_G1:_R_G1 + 1, :H]
    b1 = cv[_R_B1:_R_B1 + 1, :H]
    g2 = cv[_R_G2:_R_G2 + 1, :H]
    b2 = cv[_R_B2:_R_B2 + 1, :H]
    blk = cv[_R_BLK:_R_BLK + BS, :BS]                  # (BS, BS) 0 / -1e9

    wslab = slab_ref[...]                              # (3, H, 128) bf16
    wqkv = wslab[0, :, :3 * H]                         # (H, 3H)
    wi = wslab[1, :, :I]                               # (H, I)
    wo = wslab[2, :, :H]                               # (H, H)
    wo2 = wo2_ref[...]                                 # (I, H)

    # ---- fused Q/K/V projection: one (BS, H) @ (H, 3H) MXU push ----
    qkv = jnp.dot(xf.astype(jnp.bfloat16), wqkv,
                  preferred_element_type=jnp.float32) + bqkv       # (BS, 3H) f32
    qkv_b = qkv.astype(jnp.bfloat16)

    # additive mask over all BS keys: module mask + cross-batch kill
    addmask = mask_ref[...] + blk                      # (1,BS)+(BS,BS)->(BS,BS)

    # ---- attention per head over all B*S rows at once (2-D matmuls only);
    #      BertSelfOutput dense folded per head and accumulated on the fly ----
    acc = xf + bo                                      # residual + output bias
    for n in range(NH):
        qn = qkv_b[:, n * HD:(n + 1) * HD]                         # (BS, HD)
        kn = qkv_b[:, H + n * HD:H + (n + 1) * HD]
        vn = qkv_b[:, 2 * H + n * HD:2 * H + (n + 1) * HD]
        s = jnp.einsum('qd,kd->qk', qn, kn,
                       preferred_element_type=jnp.float32) * SCALE + addmask
        s = s - jnp.max(s, axis=-1, keepdims=True)
        p = jnp.exp(s)
        p = p * pl.reciprocal(jnp.sum(p, axis=-1, keepdims=True), approx=True)
        ctx = jnp.dot(p.astype(jnp.bfloat16), vn,
                      preferred_element_type=jnp.float32)          # (BS, HD)
        won = wo[n * HD:(n + 1) * HD, :]                           # (HD, H)
        acc = acc + jnp.dot(ctx.astype(jnp.bfloat16), won,
                            preferred_element_type=jnp.float32)    # (BS, H)

    attn = _layernorm(acc, g1, b1)                     # (BS, H) f32

    # ---- BertIntermediate: dense + exact-erf GELU ----
    inter = jnp.dot(attn.astype(jnp.bfloat16), wi,
                    preferred_element_type=jnp.float32) + bi
    inter = _gelu(inter)

    # ---- BertOutput: dense + residual + LN ----
    out = jnp.dot(inter.astype(jnp.bfloat16), wo2,
                  preferred_element_type=jnp.float32) + bo2
    out_ref[...] = _layernorm(out + attn, g2, b2)


# --------------------- one-time parameter packing (hoisted) ------------------
def pack_bert_layer_params(p):
    """Call ONCE.  Packs torch-layout params ((in, out) weight matrices) into
    the kernel operands: bf16 weight slab, bf16 wo2, and an f32 consts array."""
    wqkv = jnp.concatenate([p["wq"], p["wk"], p["wv"]], axis=1)     # (H, 3H)
    slab = jnp.zeros((3, H, 128), jnp.bfloat16)
    slab = slab.at[0, :, :3 * H].set(wqkv.astype(jnp.bfloat16))
    slab = slab.at[1, :, :I].set(p["wi"].astype(jnp.bfloat16))
    slab = slab.at[2, :, :H].set(p["wo"].astype(jnp.bfloat16))
    wo2 = p["wo2"].astype(jnp.bfloat16)                             # (I, H)

    consts = jnp.zeros((C_ROWS, 128), jnp.float32)
    bqkv = jnp.concatenate([p["bq"], p["bk"], p["bv"]], axis=1)     # (1, 3H)
    consts = consts.at[_R_BQKV, :3 * H].set(bqkv[0])
    consts = consts.at[_R_BO, :H].set(p["bo"][0])
    consts = consts.at[_R_BI, :I].set(p["bi"][0])
    consts = consts.at[_R_BO2, :H].set(p["bo2"][0])
    consts = consts.at[_R_G1, :H].set(p["g1"][0])
    consts = consts.at[_R_B1, :H].set(p["b1"][0])
    consts = consts.at[_R_G2, :H].set(p["g2"][0])
    consts = consts.at[_R_B2, :H].set(p["b2"][0])
    blk = np.full((BS, BS), NEG_BIG, np.float32)
    for b in range(B):
        blk[b * S:(b + 1) * S, b * S:(b + 1) * S] = 0.0
    consts = consts.at[_R_BLK:_R_BLK + BS, :BS].set(jnp.asarray(blk))
    return {"slab": slab, "wo2": wo2, "consts": consts}


def _bert_layer_call(xf, maskf, slab, wo2, consts):
    flops = (2 * BS * H * 3 * H                      # fused qkv
             + NH * 2 * (2 * BS * HD * BS)           # scores + ctx
             + NH * 2 * BS * HD * H                  # folded self-output dense
             + 2 * BS * H * I + 2 * BS * I * H)      # intermediate + output
    bytes_accessed = (xf.size * 4 + maskf.size * 4 + slab.size * 2
                      + wo2.size * 2 + consts.size * 4 + BS * H * 4)
    cost = pl.CostEstimate(flops=flops,
                           transcendentals=NH * BS * BS + BS * I,
                           bytes_accessed=bytes_accessed)
    return pl.pallas_call(
        bert_layer_kernel,
        out_shape=jax.ShapeDtypeStruct((BS, H), jnp.float32),
        in_specs=[pl.BlockSpec(memory_space=pltpu.MemorySpace.VMEM)] * 5,
        out_specs=pl.BlockSpec(memory_space=pltpu.MemorySpace.VMEM),
        cost_estimate=cost,
    )(xf, maskf, slab, wo2, consts)


@jax.jit
def bert_layer(x, mask2d, packed):
    """x: (B,S,H) f32; mask2d: (B,S) f32 additive attention mask;
    packed: output of pack_bert_layer_params()."""
    xf = x.reshape(BS, H).astype(jnp.float32)
    maskf = mask2d.reshape(1, BS).astype(jnp.float32)
    out = _bert_layer_call(xf, maskf, packed["slab"], packed["wo2"],
                           packed["consts"])
    return out.reshape(B, S, H)


# ------------------------- pure-JAX f32 reference ---------------------------
def bert_layer_ref(x, mask2d, p):
    q = x @ p["wq"] + p["bq"]
    k = x @ p["wk"] + p["bk"]
    v = x @ p["wv"] + p["bv"]

    def split(t):  # (B,S,H) -> (B,NH,S,HD)
        return t.reshape(B, S, NH, HD).transpose(0, 2, 1, 3)

    qh, kh, vh = split(q), split(k), split(v)
    scores = jnp.einsum("bhqd,bhkd->bhqk", qh, kh) * SCALE
    scores = scores + mask2d[:, None, None, :]
    probs = jax.nn.softmax(scores, axis=-1)
    ctx = jnp.einsum("bhqk,bhkd->bhqd", probs, vh)
    ctx = ctx.transpose(0, 2, 1, 3).reshape(B, S, H)

    def ln(t, g, b):
        u = jnp.mean(t, axis=-1, keepdims=True)
        s = jnp.mean((t - u) ** 2, axis=-1, keepdims=True)
        return (t - u) / jnp.sqrt(s + LN_EPS) * g + b

    attn = ln(ctx @ p["wo"] + p["bo"] + x, p["g1"], p["b1"])
    inter = attn @ p["wi"] + p["bi"]
    inter = inter * 0.5 * (1.0 + lax.erf(inter / math.sqrt(2.0)))
    out = ln(inter @ p["wo2"] + p["bo2"] + attn, p["g2"], p["b2"])
    return out


# --------------------------------- main -------------------------------------
if __name__ == "__main__":
    key = jax.random.PRNGKey(0)
    keys = jax.random.split(key, 16)

    def w(k, shape, scale=0.02):
        return (scale * jax.random.normal(k, shape)).astype(jnp.float32)

    params = {
        "wq": w(keys[0], (H, H)),  "bq": w(keys[1], (1, H)),
        "wk": w(keys[2], (H, H)),  "bk": w(keys[3], (1, H)),
        "wv": w(keys[4], (H, H)),  "bv": w(keys[5], (1, H)),
        "wo": w(keys[6], (H, H)),  "bo": w(keys[7], (1, H)),
        "g1": jnp.ones((1, H), jnp.float32), "b1": jnp.zeros((1, H), jnp.float32),
        "wi": w(keys[8], (H, I)),  "bi": w(keys[9], (1, I)),
        "wo2": w(keys[10], (I, H)), "bo2": w(keys[11], (1, H)),
        "g2": jnp.ones((1, H), jnp.float32), "b2": jnp.zeros((1, H), jnp.float32),
    }

    x = jax.random.normal(keys[12], (B, S, H), dtype=jnp.float32)

    # BERT-style additive attention mask: (1 - valid) * -10000, shape (B, S).
    valid = jnp.ones((B, S), jnp.float32).at[1, S - 2:].set(0.0)
    mask2d = (1.0 - valid) * -10000.0

    packed = pack_bert_layer_params(params)          # one-time packing
    packed = jax.tree_util.tree_map(jax.block_until_ready, packed)

    out = bert_layer(x, mask2d, packed)
    out = jax.block_until_ready(out)

    ref = bert_layer_ref(x, mask2d, params)
    # bf16 matmul operands + approx reciprocal (intentional) -> loosened tol.
    np.testing.assert_allclose(np.asarray(out), np.asarray(ref),
                               rtol=2e-2, atol=2e-2)
    print("KERNEL_OK")
</pallas_src>

<mosaic_0001>
module attributes {stable_mosaic.version = 11 : i64} {
  func.func @bert_layer_kernel(%arg0: memref<16x32xf32, #tpu.memory_space<vmem>>, %arg1: memref<1x16xf32, #tpu.memory_space<vmem>>, %arg2: memref<3x32x128xbf16, #tpu.memory_space<vmem>>, %arg3: memref<64x32xbf16, #tpu.memory_space<vmem>>, %arg4: memref<24x128xf32, #tpu.memory_space<vmem>>, %arg5: memref<16x32xf32, #tpu.memory_space<vmem>>) attributes {dimension_semantics = [], scalar_prefetch = 0 : i64, scratch_operands = 0 : i64, tpu.core_type = #tpu.core_type<tc>} {
    %c0 = arith.constant 0 : index
    %c0_0 = arith.constant 0 : index
    %0 = vector.load %arg0[%c0, %c0_0] : memref<16x32xf32, #tpu.memory_space<vmem>>, vector<16x32xf32>
    %c0_1 = arith.constant 0 : index
    %c0_2 = arith.constant 0 : index
    %1 = vector.load %arg4[%c0_1, %c0_2] : memref<24x128xf32, #tpu.memory_space<vmem>>, vector<24x128xf32>
    %2 = vector.extract_strided_slice %1 {offsets = [0, 0], sizes = [1, 96], strides = [1, 1]} : vector<24x128xf32> to vector<1x96xf32>
    %3 = vector.extract_strided_slice %1 {offsets = [1, 0], sizes = [1, 32], strides = [1, 1]} : vector<24x128xf32> to vector<1x32xf32>
    %4 = vector.extract_strided_slice %1 {offsets = [2, 0], sizes = [1, 64], strides = [1, 1]} : vector<24x128xf32> to vector<1x64xf32>
    %5 = vector.extract_strided_slice %1 {offsets = [3, 0], sizes = [1, 32], strides = [1, 1]} : vector<24x128xf32> to vector<1x32xf32>
    %6 = vector.extract_strided_slice %1 {offsets = [4, 0], sizes = [1, 32], strides = [1, 1]} : vector<24x128xf32> to vector<1x32xf32>
    %7 = vector.extract_strided_slice %1 {offsets = [5, 0], sizes = [1, 32], strides = [1, 1]} : vector<24x128xf32> to vector<1x32xf32>
    %8 = vector.extract_strided_slice %1 {offsets = [6, 0], sizes = [1, 32], strides = [1, 1]} : vector<24x128xf32> to vector<1x32xf32>
    %9 = vector.extract_strided_slice %1 {offsets = [7, 0], sizes = [1, 32], strides = [1, 1]} : vector<24x128xf32> to vector<1x32xf32>
    %10 = vector.extract_strided_slice %1 {offsets = [8, 0], sizes = [16, 16], strides = [1, 1]} : vector<24x128xf32> to vector<16x16xf32>
    %c0_3 = arith.constant 0 : index
    %c0_4 = arith.constant 0 : index
    %c0_5 = arith.constant 0 : index
    %11 = vector.load %arg2[%c0_3, %c0_4, %c0_5] : memref<3x32x128xbf16, #tpu.memory_space<vmem>>, vector<3x32x128xbf16>
    %12 = vector.extract_strided_slice %11 {offsets = [0, 0, 0], sizes = [1, 32, 96], strides = [1, 1, 1]} : vector<3x32x128xbf16> to vector<1x32x96xbf16>
    %13 = vector.shape_cast %12 : vector<1x32x96xbf16> to vector<32x96xbf16>
    %14 = vector.extract_strided_slice %11 {offsets = [1, 0, 0], sizes = [1, 32, 64], strides = [1, 1, 1]} : vector<3x32x128xbf16> to vector<1x32x64xbf16>
    %15 = vector.shape_cast %14 : vector<1x32x64xbf16> to vector<32x64xbf16>
    %16 = vector.extract_strided_slice %11 {offsets = [2, 0, 0], sizes = [1, 32, 32], strides = [1, 1, 1]} : vector<3x32x128xbf16> to vector<1x32x32xbf16>
    %17 = vector.shape_cast %16 : vector<1x32x32xbf16> to vector<32x32xbf16>
    %c0_6 = arith.constant 0 : index
    %c0_7 = arith.constant 0 : index
    %18 = vector.load %arg3[%c0_6, %c0_7] : memref<64x32xbf16, #tpu.memory_space<vmem>>, vector<64x32xbf16>
    %19 = arith.truncf %0 : vector<16x32xf32> to vector<16x32xbf16>
    %cst = arith.constant dense<0.000000e+00> : vector<16x96xf32>
    %20 = tpu.matmul %19, %13, %cst {dimension_numbers = #tpu.dot_dimension_numbers<[1], [0], [0], [1], [0, 0, 1, 1], [], []>} : vector<16x32xbf16>, vector<32x96xbf16>, vector<16x96xf32> -> vector<16x96xf32>
    %21 = vector.broadcast %2 : vector<1x96xf32> to vector<16x96xf32>
    %22 = arith.addf %20, %21 : vector<16x96xf32>
    %23 = arith.truncf %22 : vector<16x96xf32> to vector<16x96xbf16>
    %c0_8 = arith.constant 0 : index
    %c0_9 = arith.constant 0 : index
    %24 = vector.load %arg1[%c0_8, %c0_9] : memref<1x16xf32, #tpu.memory_space<vmem>>, vector<1x16xf32>
    %25 = vector.broadcast %24 : vector<1x16xf32> to vector<16x16xf32>
    %26 = arith.addf %25, %10 : vector<16x16xf32>
    %27 = vector.broadcast %3 : vector<1x32xf32> to vector<16x32xf32>
    %28 = arith.addf %0, %27 : vector<16x32xf32>
    %29 = vector.extract_strided_slice %23 {offsets = [0, 0], sizes = [16, 8], strides = [1, 1]} : vector<16x96xbf16> to vector<16x8xbf16>
    %30 = vector.extract_strided_slice %23 {offsets = [0, 32], sizes = [16, 8], strides = [1, 1]} : vector<16x96xbf16> to vector<16x8xbf16>
    %31 = vector.extract_strided_slice %23 {offsets = [0, 64], sizes = [16, 8], strides = [1, 1]} : vector<16x96xbf16> to vector<16x8xbf16>
    "tpu.trace_start"() <{level = 10 : i32, message = "qd,kd->qk"}> : () -> ()
    %cst_10 = arith.constant dense<0.000000e+00> : vector<16x16xf32>
    %32 = tpu.matmul %29, %30, %cst_10 {dimension_numbers = #tpu.dot_dimension_numbers<[1], [1], [0], [0], [0, 0, 1, 0], [], []>} : vector<16x8xbf16>, vector<16x8xbf16>, vector<16x16xf32> -> vector<16x16xf32>
    "tpu.trace_stop"() : () -> ()
    %cst_11 = arith.constant 0.353553385 : f32
    %33 = vector.broadcast %cst_11 : f32 to vector<16x16xf32>
    %34 = arith.mulf %32, %33 : vector<16x16xf32>
    %35 = arith.addf %34, %26 : vector<16x16xf32>
    %cst_12 = arith.constant dense<0xFF800000> : vector<16xf32>
    %36 = vector.multi_reduction <maximumf>, %35, %cst_12 [1] : vector<16x16xf32> to vector<16xf32>
    %37 = vector.shape_cast %36 : vector<16xf32> to vector<16x1xf32>
    %38 = vector.broadcast %37 : vector<16x1xf32> to vector<16x16xf32>
    %39 = arith.subf %35, %38 : vector<16x16xf32>
    %40 = math.exp %39 : vector<16x16xf32>
    %cst_13 = arith.constant dense<0.000000e+00> : vector<16xf32>
    %41 = vector.multi_reduction <add>, %40, %cst_13 [1] : vector<16x16xf32> to vector<16xf32>
    %42 = vector.shape_cast %41 : vector<16xf32> to vector<16x1xf32>
    %43 = tpu.reciprocal %42 {approx = true} : vector<16x1xf32> -> vector<16x1xf32>
    %44 = vector.broadcast %43 : vector<16x1xf32> to vector<16x16xf32>
    %45 = arith.mulf %40, %44 : vector<16x16xf32>
    %46 = arith.truncf %45 : vector<16x16xf32> to vector<16x16xbf16>
    %cst_14 = arith.constant dense<0.000000e+00> : vector<16x8xf32>
    %47 = tpu.matmul %46, %31, %cst_14 {dimension_numbers = #tpu.dot_dimension_numbers<[1], [0], [0], [1], [0, 0, 1, 1], [], []>} : vector<16x16xbf16>, vector<16x8xbf16>, vector<16x8xf32> -> vector<16x8xf32>
    %48 = vector.extract_strided_slice %17 {offsets = [0, 0], sizes = [8, 32], strides = [1, 1]} : vector<32x32xbf16> to vector<8x32xbf16>
    %49 = arith.truncf %47 : vector<16x8xf32> to vector<16x8xbf16>
    %cst_15 = arith.constant dense<0.000000e+00> : vector<16x32xf32>
    %50 = tpu.matmul %49, %48, %cst_15 {dimension_numbers = #tpu.dot_dimension_numbers<[1], [0], [0], [1], [0, 0, 1, 1], [], []>} : vector<16x8xbf16>, vector<8x32xbf16>, vector<16x32xf32> -> vector<16x32xf32>
    %51 = arith.addf %28, %50 : vector<16x32xf32>
    %52 = vector.extract_strided_slice %23 {offsets = [0, 8], sizes = [16, 8], strides = [1, 1]} : vector<16x96xbf16> to vector<16x8xbf16>
    %53 = vector.extract_strided_slice %23 {offsets = [0, 40], sizes = [16, 8], strides = [1, 1]} : vector<16x96xbf16> to vector<16x8xbf16>
    %54 = vector.extract_strided_slice %23 {offsets = [0, 72], sizes = [16, 8], strides = [1, 1]} : vector<16x96xbf16> to vector<16x8xbf16>
    "tpu.trace_start"() <{level = 10 : i32, message = "qd,kd->qk"}> : () -> ()
    %cst_16 = arith.constant dense<0.000000e+00> : vector<16x16xf32>
    %55 = tpu.matmul %52, %53, %cst_16 {dimension_numbers = #tpu.dot_dimension_numbers<[1], [1], [0], [0], [0, 0, 1, 0], [], []>} : vector<16x8xbf16>, vector<16x8xbf16>, vector<16x16xf32> -> vector<16x16xf32>
    "tpu.trace_stop"() : () -> ()
    %cst_17 = arith.constant 0.353553385 : f32
    %56 = vector.broadcast %cst_17 : f32 to vector<16x16xf32>
    %57 = arith.mulf %55, %56 : vector<16x16xf32>
    %58 = arith.addf %57, %26 : vector<16x16xf32>
    %cst_18 = arith.constant dense<0xFF800000> : vector<16xf32>
    %59 = vector.multi_reduction <maximumf>, %58, %cst_18 [1] : vector<16x16xf32> to vector<16xf32>
    %60 = vector.shape_cast %59 : vector<16xf32> to vector<16x1xf32>
    %61 = vector.broadcast %60 : vector<16x1xf32> to vector<16x16xf32>
    %62 = arith.subf %58, %61 : vector<16x16xf32>
    %63 = math.exp %62 : vector<16x16xf32>
    %cst_19 = arith.constant dense<0.000000e+00> : vector<16xf32>
    %64 = vector.multi_reduction <add>, %63, %cst_19 [1] : vector<16x16xf32> to vector<16xf32>
    %65 = vector.shape_cast %64 : vector<16xf32> to vector<16x1xf32>
    %66 = tpu.reciprocal %65 {approx = true} : vector<16x1xf32> -> vector<16x1xf32>
    %67 = vector.broadcast %66 : vector<16x1xf32> to vector<16x16xf32>
    %68 = arith.mulf %63, %67 : vector<16x16xf32>
    %69 = arith.truncf %68 : vector<16x16xf32> to vector<16x16xbf16>
    %cst_20 = arith.constant dense<0.000000e+00> : vector<16x8xf32>
    %70 = tpu.matmul %69, %54, %cst_20 {dimension_numbers = #tpu.dot_dimension_numbers<[1], [0], [0], [1], [0, 0, 1, 1], [], []>} : vector<16x16xbf16>, vector<16x8xbf16>, vector<16x8xf32> -> vector<16x8xf32>
    %71 = vector.extract_strided_slice %17 {offsets = [8, 0], sizes = [8, 32], strides = [1, 1]} : vector<32x32xbf16> to vector<8x32xbf16>
    %72 = arith.truncf %70 : vector<16x8xf32> to vector<16x8xbf16>
    %cst_21 = arith.constant dense<0.000000e+00> : vector<16x32xf32>
    %73 = tpu.matmul %72, %71, %cst_21 {dimension_numbers = #tpu.dot_dimension_numbers<[1], [0], [0], [1], [0, 0, 1, 1], [], []>} : vector<16x8xbf16>, vector<8x32xbf16>, vector<16x32xf32> -> vector<16x32xf32>
    %74 = arith.addf %51, %73 : vector<16x32xf32>
    %75 = vector.extract_strided_slice %23 {offsets = [0, 16], sizes = [16, 8], strides = [1, 1]} : vector<16x96xbf16> to vector<16x8xbf16>
    %76 = vector.extract_strided_slice %23 {offsets = [0, 48], sizes = [16, 8], strides = [1, 1]} : vector<16x96xbf16> to vector<16x8xbf16>
    %77 = vector.extract_strided_slice %23 {offsets = [0, 80], sizes = [16, 8], strides = [1, 1]} : vector<16x96xbf16> to vector<16x8xbf16>
    "tpu.trace_start"() <{level = 10 : i32, message = "qd,kd->qk"}> : () -> ()
    %cst_22 = arith.constant dense<0.000000e+00> : vector<16x16xf32>
    %78 = tpu.matmul %75, %76, %cst_22 {dimension_numbers = #tpu.dot_dimension_numbers<[1], [1], [0], [0], [0, 0, 1, 0], [], []>} : vector<16x8xbf16>, vector<16x8xbf16>, vector<16x16xf32> -> vector<16x16xf32>
    "tpu.trace_stop"() : () -> ()
    %cst_23 = arith.constant 0.353553385 : f32
    %79 = vector.broadcast %cst_23 : f32 to vector<16x16xf32>
    %80 = arith.mulf %78, %79 : vector<16x16xf32>
    %81 = arith.addf %80, %26 : vector<16x16xf32>
    %cst_24 = arith.constant dense<0xFF800000> : vector<16xf32>
    %82 = vector.multi_reduction <maximumf>, %81, %cst_24 [1] : vector<16x16xf32> to vector<16xf32>
    %83 = vector.shape_cast %82 : vector<16xf32> to vector<16x1xf32>
    %84 = vector.broadcast %83 : vector<16x1xf32> to vector<16x16xf32>
    %85 = arith.subf %81, %84 : vector<16x16xf32>
    %86 = math.exp %85 : vector<16x16xf32>
    %cst_25 = arith.constant dense<0.000000e+00> : vector<16xf32>
    %87 = vector.multi_reduction <add>, %86, %cst_25 [1] : vector<16x16xf32> to vector<16xf32>
    %88 = vector.shape_cast %87 : vector<16xf32> to vector<16x1xf32>
    %89 = tpu.reciprocal %88 {approx = true} : vector<16x1xf32> -> vector<16x1xf32>
    %90 = vector.broadcast %89 : vector<16x1xf32> to vector<16x16xf32>
    %91 = arith.mulf %86, %90 : vector<16x16xf32>
    %92 = arith.truncf %91 : vector<16x16xf32> to vector<16x16xbf16>
    %cst_26 = arith.constant dense<0.000000e+00> : vector<16x8xf32>
    %93 = tpu.matmul %92, %77, %cst_26 {dimension_numbers = #tpu.dot_dimension_numbers<[1], [0], [0], [1], [0, 0, 1, 1], [], []>} : vector<16x16xbf16>, vector<16x8xbf16>, vector<16x8xf32> -> vector<16x8xf32>
    %94 = vector.extract_strided_slice %17 {offsets = [16, 0], sizes = [8, 32], strides = [1, 1]} : vector<32x32xbf16> to vector<8x32xbf16>
    %95 = arith.truncf %93 : vector<16x8xf32> to vector<16x8xbf16>
    %cst_27 = arith.constant dense<0.000000e+00> : vector<16x32xf32>
    %96 = tpu.matmul %95, %94, %cst_27 {dimension_numbers = #tpu.dot_dimension_numbers<[1], [0], [0], [1], [0, 0, 1, 1], [], []>} : vector<16x8xbf16>, vector<8x32xbf16>, vector<16x32xf32> -> vector<16x32xf32>
    %97 = arith.addf %74, %96 : vector<16x32xf32>
    %98 = vector.extract_strided_slice %23 {offsets = [0, 24], sizes = [16, 8], strides = [1, 1]} : vector<16x96xbf16> to vector<16x8xbf16>
    %99 = vector.extract_strided_slice %23 {offsets = [0, 56], sizes = [16, 8], strides = [1, 1]} : vector<16x96xbf16> to vector<16x8xbf16>
    %100 = vector.extract_strided_slice %23 {offsets = [0, 88], sizes = [16, 8], strides = [1, 1]} : vector<16x96xbf16> to vector<16x8xbf16>
    "tpu.trace_start"() <{level = 10 : i32, message = "qd,kd->qk"}> : () -> ()
    %cst_28 = arith.constant dense<0.000000e+00> : vector<16x16xf32>
    %101 = tpu.matmul %98, %99, %cst_28 {dimension_numbers = #tpu.dot_dimension_numbers<[1], [1], [0], [0], [0, 0, 1, 0], [], []>} : vector<16x8xbf16>, vector<16x8xbf16>, vector<16x16xf32> -> vector<16x16xf32>
    "tpu.trace_stop"() : () -> ()
    %cst_29 = arith.constant 0.353553385 : f32
    %102 = vector.broadcast %cst_29 : f32 to vector<16x16xf32>
    %103 = arith.mulf %101, %102 : vector<16x16xf32>
    %104 = arith.addf %103, %26 : vector<16x16xf32>
    %cst_30 = arith.constant dense<0xFF800000> : vector<16xf32>
    %105 = vector.multi_reduction <maximumf>, %104, %cst_30 [1] : vector<16x16xf32> to vector<16xf32>
    %106 = vector.shape_cast %105 : vector<16xf32> to vector<16x1xf32>
    %107 = vector.broadcast %106 : vector<16x1xf32> to vector<16x16xf32>
    %108 = arith.subf %104, %107 : vector<16x16xf32>
    %109 = math.exp %108 : vector<16x16xf32>
    %cst_31 = arith.constant dense<0.000000e+00> : vector<16xf32>
    %110 = vector.multi_reduction <add>, %109, %cst_31 [1] : vector<16x16xf32> to vector<16xf32>
    %111 = vector.shape_cast %110 : vector<16xf32> to vector<16x1xf32>
    %112 = tpu.reciprocal %111 {approx = true} : vector<16x1xf32> -> vector<16x1xf32>
    %113 = vector.broadcast %112 : vector<16x1xf32> to vector<16x16xf32>
    %114 = arith.mulf %109, %113 : vector<16x16xf32>
    %115 = arith.truncf %114 : vector<16x16xf32> to vector<16x16xbf16>
    %cst_32 = arith.constant dense<0.000000e+00> : vector<16x8xf32>
    %116 = tpu.matmul %115, %100, %cst_32 {dimension_numbers = #tpu.dot_dimension_numbers<[1], [0], [0], [1], [0, 0, 1, 1], [], []>} : vector<16x16xbf16>, vector<16x8xbf16>, vector<16x8xf32> -> vector<16x8xf32>
    %117 = vector.extract_strided_slice %17 {offsets = [24, 0], sizes = [8, 32], strides = [1, 1]} : vector<32x32xbf16> to vector<8x32xbf16>
    %118 = arith.truncf %116 : vector<16x8xf32> to vector<16x8xbf16>
    %cst_33 = arith.constant dense<0.000000e+00> : vector<16x32xf32>
    %119 = tpu.matmul %118, %117, %cst_33 {dimension_numbers = #tpu.dot_dimension_numbers<[1], [0], [0], [1], [0, 0, 1, 1], [], []>} : vector<16x8xbf16>, vector<8x32xbf16>, vector<16x32xf32> -> vector<16x32xf32>
    %120 = arith.addf %97, %119 : vector<16x32xf32>
    %cst_34 = arith.constant dense<0.000000e+00> : vector<16xf32>
    %121 = vector.multi_reduction <add>, %120, %cst_34 [1] : vector<16x32xf32> to vector<16xf32>
    %122 = vector.shape_cast %121 : vector<16xf32> to vector<16x1xf32>
    %cst_35 = arith.constant 3.200000e+01 : f32
    %123 = vector.broadcast %cst_35 : f32 to vector<16x1xf32>
    %124 = arith.divf %122, %123 : vector<16x1xf32>
    %125 = vector.broadcast %124 : vector<16x1xf32> to vector<16x32xf32>
    %126 = arith.subf %120, %125 : vector<16x32xf32>
    %127 = arith.mulf %126, %126 : vector<16x32xf32>
    %cst_36 = arith.constant dense<0.000000e+00> : vector<16xf32>
    %128 = vector.multi_reduction <add>, %127, %cst_36 [1] : vector<16x32xf32> to vector<16xf32>
    %129 = vector.shape_cast %128 : vector<16xf32> to vector<16x1xf32>
    %cst_37 = arith.constant 3.200000e+01 : f32
    %130 = vector.broadcast %cst_37 : f32 to vector<16x1xf32>
    %131 = arith.divf %129, %130 : vector<16x1xf32>
    %cst_38 = arith.constant 9.99999996E-13 : f32
    %132 = vector.broadcast %cst_38 : f32 to vector<16x1xf32>
    %133 = arith.addf %131, %132 : vector<16x1xf32>
    %134 = math.rsqrt %133 : vector<16x1xf32>
    %135 = vector.broadcast %134 : vector<16x1xf32> to vector<16x32xf32>
    %136 = arith.mulf %126, %135 : vector<16x32xf32>
    %137 = vector.broadcast %6 : vector<1x32xf32> to vector<16x32xf32>
    %138 = arith.mulf %136, %137 : vector<16x32xf32>
    %139 = vector.broadcast %7 : vector<1x32xf32> to vector<16x32xf32>
    %140 = arith.addf %138, %139 : vector<16x32xf32>
    %141 = arith.truncf %140 : vector<16x32xf32> to vector<16x32xbf16>
    %cst_39 = arith.constant dense<0.000000e+00> : vector<16x64xf32>
    %142 = tpu.matmul %141, %15, %cst_39 {dimension_numbers = #tpu.dot_dimension_numbers<[1], [0], [0], [1], [0, 0, 1, 1], [], []>} : vector<16x32xbf16>, vector<32x64xbf16>, vector<16x64xf32> -> vector<16x64xf32>
    %143 = vector.broadcast %4 : vector<1x64xf32> to vector<16x64xf32>
    %144 = arith.addf %142, %143 : vector<16x64xf32>
    %cst_40 = arith.constant 5.000000e-01 : f32
    %145 = vector.broadcast %cst_40 : f32 to vector<16x64xf32>
    %146 = arith.mulf %144, %145 : vector<16x64xf32>
    %cst_41 = arith.constant 0.707106769 : f32
    %147 = vector.broadcast %cst_41 : f32 to vector<16x64xf32>
    %148 = arith.mulf %144, %147 : vector<16x64xf32>
    %149 = math.erf %148 : vector<16x64xf32>
    %cst_42 = arith.constant 1.000000e+00 : f32
    %150 = vector.broadcast %cst_42 : f32 to vector<16x64xf32>
    %151 = arith.addf %150, %149 : vector<16x64xf32>
    %152 = arith.mulf %146, %151 : vector<16x64xf32>
    %153 = arith.truncf %152 : vector<16x64xf32> to vector<16x64xbf16>
    %cst_43 = arith.constant dense<0.000000e+00> : vector<16x32xf32>
    %154 = tpu.matmul %153, %18, %cst_43 {dimension_numbers = #tpu.dot_dimension_numbers<[1], [0], [0], [1], [0, 0, 1, 1], [], []>} : vector<16x64xbf16>, vector<64x32xbf16>, vector<16x32xf32> -> vector<16x32xf32>
    %155 = vector.broadcast %5 : vector<1x32xf32> to vector<16x32xf32>
    %156 = arith.addf %154, %155 : vector<16x32xf32>
    %157 = arith.addf %156, %140 : vector<16x32xf32>
    %cst_44 = arith.constant dense<0.000000e+00> : vector<16xf32>
    %158 = vector.multi_reduction <add>, %157, %cst_44 [1] : vector<16x32xf32> to vector<16xf32>
    %159 = vector.shape_cast %158 : vector<16xf32> to vector<16x1xf32>
    %cst_45 = arith.constant 3.200000e+01 : f32
    %160 = vector.broadcast %cst_45 : f32 to vector<16x1xf32>
    %161 = arith.divf %159, %160 : vector<16x1xf32>
    %162 = vector.broadcast %161 : vector<16x1xf32> to vector<16x32xf32>
    %163 = arith.subf %157, %162 : vector<16x32xf32>
    %164 = arith.mulf %163, %163 : vector<16x32xf32>
    %cst_46 = arith.constant dense<0.000000e+00> : vector<16xf32>
    %165 = vector.multi_reduction <add>, %164, %cst_46 [1] : vector<16x32xf32> to vector<16xf32>
    %166 = vector.shape_cast %165 : vector<16xf32> to vector<16x1xf32>
    %cst_47 = arith.constant 3.200000e+01 : f32
    %167 = vector.broadcast %cst_47 : f32 to vector<16x1xf32>
    %168 = arith.divf %166, %167 : vector<16x1xf32>
    %cst_48 = arith.constant 9.99999996E-13 : f32
    %169 = vector.broadcast %cst_48 : f32 to vector<16x1xf32>
    %170 = arith.addf %168, %169 : vector<16x1xf32>
    %171 = math.rsqrt %170 : vector<16x1xf32>
    %172 = vector.broadcast %171 : vector<16x1xf32> to vector<16x32xf32>
    %173 = arith.mulf %163, %172 : vector<16x32xf32>
    %174 = vector.broadcast %8 : vector<1x32xf32> to vector<16x32xf32>
    %175 = arith.mulf %173, %174 : vector<16x32xf32>
    %176 = vector.broadcast %9 : vector<1x32xf32> to vector<16x32xf32>
    %177 = arith.addf %175, %176 : vector<16x32xf32>
    %c0_49 = arith.constant 0 : index
    %c0_50 = arith.constant 0 : index
    %178 = vector.load %arg5[%c0_49, %c0_50] : memref<16x32xf32, #tpu.memory_space<vmem>>, vector<16x32xf32>
    tpu.vector_store %arg5[%c0_49, %c0_50], %177 {strides = array<i32>} : memref<16x32xf32, #tpu.memory_space<vmem>>, vector<16x32xf32>,
    return
  }
}

</mosaic_0001>

<llo_original>
// kernel: bert_layer.1
$region0: #{bert_layer.1}
  #allocation0 [shape = 'u32[]', space=smem, size = 0x4, offset = 0x4, fixed_abs, tag = 'smem constant byte address 0x4 - core index']
  #allocation1 [shape = 'u32[72,128]{1,0:T(1,128)}', space=vmem, size = 0x9000, scoped, tag = 'internal scratch']
  %s0 = inlined_call_operand.hbm [shape: f32[16,32], index: 0, kind: input, shape index: {}]
  %s1 = inlined_call_operand.vmem [shape: f32[1,16], index: 1, kind: input, shape index: {}]
  %s2 = inlined_call_operand.vmem [shape: bf16[3,32,128], index: 2, kind: input, shape index: {}]
  %s3 = inlined_call_operand.vmem [shape: bf16[64,32], index: 3, kind: input, shape index: {}]
  %s4 = inlined_call_operand.hbm [shape: f32[24,128], index: 4, kind: input, shape index: {}]
  %s5 = inlined_call_operand.hbm [shape: f32[16,32], index: 5, kind: output, shape index: {}]
  %s6 = sld [smem:[#allocation0]]
  $region38: #{bert_layer.1} parent=0
    _
  %s8 = ssub.s32 1, %s6
  %s9 = scalar_select 0, %s8, %s6
  $region1: #{bert_layer.1} parent=0
    #allocation2 [shape = 'u8[8192]{0}', space=vmem, size = 0x2000, scoped, tag = 'input window, operand 0, single buffered']
    #allocation3 [shape = 's32[1]{0}', space=sflag, size = 0x4, scoped, tag = 'scoped memory for bert_layer.1']
    #allocation4 [shape = 's32[1]{0}', space=sflag, size = 0x4, scoped, tag = 'scoped memory for bert_layer.1']
    #allocation5 [shape = 'u8[12288]{0}', space=vmem, size = 0x3000, scoped, tag = 'input window, operand 4, single buffered']
    #allocation6 [shape = 's32[1]{0}', space=sflag, size = 0x4, scoped, tag = 'scoped memory for bert_layer.1']
    #allocation7 [shape = 'u8[8192]{0}', space=vmem, size = 0x2000, scoped, tag = 'output window, operand 0, single buffered']
    %10 = vsyncpa [#allocation3], 0
    %11 = vsyncpa [#allocation6], 0
    %12 = vsyncpa [#allocation4], 0
    // Predicated region
    $region2: #{bert_layer.1} parent=1 // pred_check
      _
    $region3: #{bert_layer.1} parent=1 // pred_check_branch
      %14 = sbr.rel (0) target = $region5
    $region4: #{bert_layer.1} parent=1 // pred_region
      %16 = vsyncadd [#allocation3], 0
      %s17 = sshll.u32 %s0, 4
      %s18 = int_to_ptr.hbm [resolvable:$true] %s17
      %s19 = sshll.u32 [#allocation2], 4
      %s20 = int_to_ptr.vmem [resolvable:$true] %s19
      %25 = dma.hbm_to_vmem [thread:$0]  %s18, 256, %s20, [#allocation3], 128, 128, 8
    $region5: #{bert_layer.1} parent=1 // pred_fallthru
      _
    // Predicated region
    $region6: #{bert_layer.1} parent=1 // pred_check
      _
    $region7: #{bert_layer.1} parent=1 // pred_check_branch
      %27 = sbr.rel (0) target = $region9
    $region8: #{bert_layer.1} parent=1 // pred_region
      _
    $region9: #{bert_layer.1} parent=1 // pred_fallthru
      _
    // Predicated region
    $region10: #{bert_layer.1} parent=1 // pred_check
      _
    $region11: #{bert_layer.1} parent=1 // pred_check_branch
      %29 = sbr.rel (0) target = $region13
    $region12: #{bert_layer.1} parent=1 // pred_region
      _
    $region13: #{bert_layer.1} parent=1 // pred_fallthru
      _
    // Predicated region
    $region14: #{bert_layer.1} parent=1 // pred_check
      _
    $region15: #{bert_layer.1} parent=1 // pred_check_branch
      %31 = sbr.rel (0) target = $region17
    $region16: #{bert_layer.1} parent=1 // pred_region
      _
    $region17: #{bert_layer.1} parent=1 // pred_fallthru
      _
    // Predicated region
    $region18: #{bert_layer.1} parent=1 // pred_check
      _
    $region19: #{bert_layer.1} parent=1 // pred_check_branch
      %33 = sbr.rel (0) target = $region21
    $region20: #{bert_layer.1} parent=1 // pred_region
      %35 = vsyncadd [#allocation6], 0
      %s36 = sshll.u32 %s4, 4
      %s37 = int_to_ptr.hbm [resolvable:$true] %s36
      %s38 = sshll.u32 [#allocation5], 4
      %s39 = int_to_ptr.vmem [resolvable:$true] %s38
      %44 = dma.hbm_to_vmem [thread:$0]  %s37, 384, %s39, [#allocation6], 128, 128, 8
    $region21: #{bert_layer.1} parent=1 // pred_fallthru
      _
    // Predicated region
    $region22: #{bert_layer.1} parent=1 // pred_check
      _
    $region23: #{bert_layer.1} parent=1 // pred_check_branch
      %46 = sbr.rel (0) target = $region25
    $region24: #{bert_layer.1} parent=1 // pred_region
      %48 = dma.done [#allocation3], 256
    $region25: #{bert_layer.1} parent=1 // pred_fallthru
      _
    // Predicated region
    $region26: #{bert_layer.1} parent=1 // pred_check
      _
    $region27: #{bert_layer.1} parent=1 // pred_check_branch
      %50 = sbr.rel (0) target = $region29
    $region28: #{bert_layer.1} parent=1 // pred_region
      %52 = dma.done [#allocation6], 384
    $region29: #{bert_layer.1} parent=1 // pred_fallthru
      _
    %v54 = vld [vmem:[#allocation2] sm:$0xff]
    %v55 = vld [vmem:[#allocation2 + $0x8] sm:$0xff]
    %v56 = vld [vmem:[#allocation5] sm:$0xff]
    %v57 = vld [vmem:[#allocation5 + $0x8] sm:$0xff]
    %v58 = vld [vmem:[#allocation5 + $0x10] sm:$0xff]
    %v59 = vld [vmem:[%s2] sm:$0xf]
    %v60 = vld [vmem:[%s2 + $0x4] sm:$0xf]
    %v61 = vld [vmem:[%s2 + $0x8] sm:$0xf]
    %v62 = vld [vmem:[%s2 + $0xc] sm:$0xf]
    %v63 = vld [vmem:[%s2 + $0x10] sm:$0xf]
    %v64 = vld [vmem:[%s2 + $0x14] sm:$0xf]
    %v65 = vld [vmem:[%s2 + $0x18] sm:$0xf]
    %v66 = vld [vmem:[%s2 + $0x1c] sm:$0xf]
    %v67 = vld [vmem:[%s2 + $0x20] sm:$0xf]
    %v68 = vld [vmem:[%s2 + $0x24] sm:$0xf]
    %v69 = vld [vmem:[%s2 + $0x28] sm:$0xf]
    %v70 = vld [vmem:[%s2 + $0x2c] sm:$0xf]
    %v71 = vld [vmem:[%s3] sm:$0xf]
    %v72 = vld [vmem:[%s3 + $0x4] sm:$0xf]
    %v73 = vld [vmem:[%s3 + $0x8] sm:$0xf]
    %v74 = vld [vmem:[%s3 + $0xc] sm:$0xf]
    %v75 = vld [vmem:[%s3 + $0x10] sm:$0xf]
    %v76 = vld [vmem:[%s3 + $0x14] sm:$0xf]
    %v77 = vld [vmem:[%s3 + $0x18] sm:$0xf]
    %v78 = vld [vmem:[%s3 + $0x1c] sm:$0xf]
    %v79 = vpack.c.bf16 %v55, %v54
    %v80 = vperm.slane %v56, 0
    %v85 = vunpack.c.l.b16 %v59
    %v86 = vunpack.c.l.b16 %v60
    %v87 = vunpack.c.l.b16 %v61
    %v88 = vunpack.c.l.b16 %v62
    %v89 = vpack.c.b16 %v86, %v85
    %v90 = vpack.c.b16 %v88, %v87
    %vm93 = vcmask 261120
    %v95 = vsel %vm93, %v79, 0
    %97 = vmatpush.bf16.msra.mxu0 0
    %98 = vmatpush.bf16.msra.mxu0 0
    %99 = vmatpush.bf16.msra.mxu0 0
    %100 = vmatpush.bf16.msra.mxu0 0
    %101 = vmatpush.bf16.msra.mxu0 0
    %102 = vmatpush.bf16.msra.mxu0 0
    %103 = vmatpush.bf16.msra.mxu0 %v90
    %104 = vmatpush.bf16.msra.mxu0 %v89
    %105 = vmatmul.bf16.gmra.mxu0 %v95
    %v106 = vpop.f32.mrf.mxu0
    %v107 = vadd.f32 %v80, %v106
    %v108 = vpop.f32.mrf.mxu0
    %v109 = vadd.f32 %v80, %v108
    %110 = vdwg.mxu0
    %v111 = vpack.c.bf16 %v107, %v107
    %v112 = vpack.c.bf16 %v109, %v109
    %v113 = vld [vmem:[%s1] sm:$0x1]
    %v115 = vperm.slane %v113, 0
    %v117 = vadd.f32 %v115, %v57
    %v118 = vadd.f32 %v115, %v58
    %v119 = vperm.slane %v56, 1
    %v120 = vadd.f32 %v54, %v119
    %v121 = vadd.f32 %v55, %v119
    %v124 = vunpack.c.l.b16 %v111
    %v125 = vunpack.c.l.b16 %v112
    %v126 = vpack.c.b16 %v125, %v124
    %127 = vrot.lane.b32.xlu0 %v126, 96
    %v128 = vpop.permute.xlu0 %127
    %vm129 = vcmask 64512
    %v131 = vsel %vm129, %v126, 0
    %v134 = vsel %vm129, %v128, 0
    %136 = vmatpush.bf16.xpose.msra.mxu0 0
    %137 = vmatpush.bf16.xpose.msra.mxu0 0
    %138 = vmatpush.bf16.xpose.msra.mxu0 0
    %139 = vmatpush.bf16.xpose.msra.mxu0 0
    %140 = vmatpush.bf16.xpose.msra.mxu0 0
    %141 = vmatpush.bf16.xpose.msra.mxu0 0
    %142 = vmatpush.bf16.xpose.msra.mxu0 0
    %143 = vmatpush.bf16.xpose.msra.mxu0 %v134
    %144 = vmatmul.bf16.gmra.mxu0 %v131
    %v145 = vpop.f32.mrf.mxu0
    %v146 = vadd.f32 0.0, %v145
    %v147 = vpop.f32.mrf.mxu0
    %v148 = vadd.f32 0.0, %v147
    %149 = vdwg.mxu0
    %v150 = vmul.f32 %v146, 0.35355338
    %v151 = vmul.f32 %v148, 0.35355338
    %v152 = vadd.f32 %v150, %v117
    %v153 = vadd.f32 %v151, %v118
    %vm154 = vcmask 130048
    %v155 = vsel %vm154, %v152, -inf
    %156 = vmax.xlane.f32.xlu0 %v155
    %v157 = vpop.xlane.xlu0 %156
    %v158 = vsel %vm154, %v153, -inf
    %159 = vmax.xlane.f32.xlu0 %v158
    %v160 = vpop.xlane.xlu0 %159
    %v161 = vsub.f32 %v152, %v157
    %v162 = vsub.f32 %v153, %v160
    %v163 = vmul.f32 %v161, 1.442695
    %v164 = vpow.pop %v163
    %v165 = vmul.f32 %v162, 1.442695
    %v166 = vpow.pop %v165
    %v167 = vsel %vm154, %v164, 0.0
    %168 = vadd.xlane.f32.xlu0 %v167
    %v169 = vpop.xlane.xlu0 %168
    %v170 = vsel %vm154, %v166, 0.0
    %171 = vadd.xlane.f32.xlu0 %v170
    %v172 = vpop.xlane.xlu0 %171
    %v173 = vrcp.pop %v169
    %v174 = vrcp.pop %v172
    %v175 = vmul.f32 %v164, %v173
    %v176 = vmul.f32 %v166, %v174
    %v177 = vpack.c.bf16 %v176, %v175
    %178 = vrot.lane.b32.xlu0 %v126, 64
    %v179 = vpop.permute.xlu0 %178
    %v182 = vsel %vm154, %v177, 0
    %184 = vmatpush.bf16.msra.mxu0 0
    %185 = vmatpush.bf16.msra.mxu0 0
    %186 = vmatpush.bf16.msra.mxu0 0
    %187 = vmatpush.bf16.msra.mxu0 0
    %188 = vmatpush.bf16.msra.mxu0 0
    %189 = vmatpush.bf16.msra.mxu0 0
    %190 = vmatpush.bf16.msra.mxu0 0
    %191 = vmatpush.bf16.msra.mxu0 %v179
    %192 = vmatmul.bf16.gmra.mxu0 %v182
    %v193 = vpop.f32.mrf.mxu0
    %v194 = vadd.f32 0.0, %v193
    %v195 = vpop.f32.mrf.mxu0
    %v196 = vadd.f32 0.0, %v195
    %197 = vdwg.mxu0
    %v198 = vpack.c.bf16 %v196, %v194
    %v200 = vsel %vm129, %v198, 0
    %vm202 = vcmask 1043456
    %v204 = vsel %vm202, %v67, 0
    %206 = vmatpush.bf16.msra.mxu0 0
    %207 = vmatpush.bf16.msra.mxu0 0
    %208 = vmatpush.bf16.msra.mxu0 0
    %209 = vmatpush.bf16.msra.mxu0 0
    %210 = vmatpush.bf16.msra.mxu0 0
    %211 = vmatpush.bf16.msra.mxu0 0
    %212 = vmatpush.bf16.msra.mxu0 0
    %213 = vmatpush.bf16.msra.mxu0 %v204
    %214 = vmatmul.bf16.gmra.mxu0 %v200
    %v215 = vpop.f32.mrf.mxu0
    %v216 = vadd.f32 0.0, %v215
    %v217 = vpop.f32.mrf.mxu0
    %v218 = vadd.f32 0.0, %v217
    %219 = vdwg.mxu0
    %v220 = vadd.f32 %v120, %v216
    %v221 = vadd.f32 %v121, %v218
    %222 = vrot.lane.b32.xlu0 %v126, 120
    %v223 = vpop.permute.xlu0 %222
    %224 = vrot.lane.b32.xlu0 %v126, 88
    %v225 = vpop.permute.xlu0 %224
    %v227 = vsel %vm129, %v223, 0
    %v230 = vsel %vm129, %v225, 0
    %232 = vmatpush.bf16.xpose.msra.mxu0 0
    %233 = vmatpush.bf16.xpose.msra.mxu0 0
    %234 = vmatpush.bf16.xpose.msra.mxu0 0
    %235 = vmatpush.bf16.xpose.msra.mxu0 0
    %236 = vmatpush.bf16.xpose.msra.mxu0 0
    %237 = vmatpush.bf16.xpose.msra.mxu0 0
    %238 = vmatpush.bf16.xpose.msra.mxu0 0
    %239 = vmatpush.bf16.xpose.msra.mxu0 %v230
    %240 = vmatmul.bf16.gmra.mxu0 %v227
    %v241 = vpop.f32.mrf.mxu0
    %v242 = vadd.f32 0.0, %v241
    %v243 = vpop.f32.mrf.mxu0
    %v244 = vadd.f32 0.0, %v243
    %245 = vdwg.mxu0
    %v246 = vmul.f32 %v242, 0.35355338
    %v247 = vmul.f32 %v244, 0.35355338
    %v248 = vadd.f32 %v246, %v117
    %v249 = vadd.f32 %v247, %v118
    %v250 = vsel %vm154, %v248, -inf
    %251 = vmax.xlane.f32.xlu0 %v250
    %v252 = vpop.xlane.xlu0 %251
    %v253 = vsel %vm154, %v249, -inf
    %254 = vmax.xlane.f32.xlu0 %v253
    %v255 = vpop.xlane.xlu0 %254
    %v256 = vsub.f32 %v248, %v252
    %v257 = vsub.f32 %v249, %v255
    %v258 = vmul.f32 %v256, 1.442695
    %v259 = vpow.pop %v258
    %v260 = vmul.f32 %v257, 1.442695
    %v261 = vpow.pop %v260
    %v262 = vsel %vm154, %v259, 0.0
    %263 = vadd.xlane.f32.xlu0 %v262
    %v264 = vpop.xlane.xlu0 %263
    %v265 = vsel %vm154, %v261, 0.0
    %266 = vadd.xlane.f32.xlu0 %v265
    %v267 = vpop.xlane.xlu0 %266
    %v268 = vrcp.pop %v264
    %v269 = vrcp.pop %v267
    %v270 = vmul.f32 %v259, %v268
    %v271 = vmul.f32 %v261, %v269
    %v272 = vpack.c.bf16 %v271, %v270
    %273 = vrot.lane.b32.xlu0 %v126, 56
    %v274 = vpop.permute.xlu0 %273
    %v277 = vsel %vm154, %v272, 0
    %279 = vmatpush.bf16.msra.mxu0 0
    %280 = vmatpush.bf16.msra.mxu0 0
    %281 = vmatpush.bf16.msra.mxu0 0
    %282 = vmatpush.bf16.msra.mxu0 0
    %283 = vmatpush.bf16.msra.mxu0 0
    %284 = vmatpush.bf16.msra.mxu0 0
    %285 = vmatpush.bf16.msra.mxu0 0
    %286 = vmatpush.bf16.msra.mxu0 %v274
    %287 = vmatmul.bf16.gmra.mxu0 %v277
    %v288 = vpop.f32.mrf.mxu0
    %v289 = vadd.f32 0.0, %v288
    %v290 = vpop.f32.mrf.mxu0
    %v291 = vadd.f32 0.0, %v290
    %292 = vdwg.mxu0
    %v293 = vpack.c.bf16 %v291, %v289
    %v295 = vsel %vm129, %v293, 0
    %v298 = vsel %vm202, %v68, 0
    %300 = vmatpush.bf16.msra.mxu0 0
    %301 = vmatpush.bf16.msra.mxu0 0
    %302 = vmatpush.bf16.msra.mxu0 0
    %303 = vmatpush.bf16.msra.mxu0 0
    %304 = vmatpush.bf16.msra.mxu0 0
    %305 = vmatpush.bf16.msra.mxu0 0
    %306 = vmatpush.bf16.msra.mxu0 0
    %307 = vmatpush.bf16.msra.mxu0 %v298
    %308 = vmatmul.bf16.gmra.mxu0 %v295
    %v309 = vpop.f32.mrf.mxu0
    %v310 = vadd.f32 0.0, %v309
    %v311 = vpop.f32.mrf.mxu0
    %v312 = vadd.f32 0.0, %v311
    %313 = vdwg.mxu0
    %v314 = vadd.f32 %v220, %v310
    %v315 = vadd.f32 %v221, %v312
    %316 = vrot.lane.b32.xlu0 %v126, 112
    %v317 = vpop.permute.xlu0 %316
    %318 = vrot.lane.b32.xlu0 %v126, 80
    %v319 = vpop.permute.xlu0 %318
    %v321 = vsel %vm129, %v317, 0
    %v324 = vsel %vm129, %v319, 0
    %326 = vmatpush.bf16.xpose.msra.mxu0 0
    %327 = vmatpush.bf16.xpose.msra.mxu0 0
    %328 = vmatpush.bf16.xpose.msra.mxu0 0
    %329 = vmatpush.bf16.xpose.msra.mxu0 0
    %330 = vmatpush.bf16.xpose.msra.mxu0 0
    %331 = vmatpush.bf16.xpose.msra.mxu0 0
    %332 = vmatpush.bf16.xpose.msra.mxu0 0
    %333 = vmatpush.bf16.xpose.msra.mxu0 %v324
    %334 = vmatmul.bf16.gmra.mxu0 %v321
    %v335 = vpop.f32.mrf.mxu0
    %v336 = vadd.f32 0.0, %v335
    %v337 = vpop.f32.mrf.mxu0
    %v338 = vadd.f32 0.0, %v337
    %339 = vdwg.mxu0
    %v340 = vmul.f32 %v336, 0.35355338
    %v341 = vmul.f32 %v338, 0.35355338
    %v342 = vadd.f32 %v340, %v117
    %v343 = vadd.f32 %v341, %v118
    %v344 = vsel %vm154, %v342, -inf
    %345 = vmax.xlane.f32.xlu0 %v344
    %v346 = vpop.xlane.xlu0 %345
    %v347 = vsel %vm154, %v343, -inf
    %348 = vmax.xlane.f32.xlu0 %v347
    %v349 = vpop.xlane.xlu0 %348
    %v350 = vsub.f32 %v342, %v346
    %v351 = vsub.f32 %v343, %v349
    %v352 = vmul.f32 %v350, 1.442695
    %v353 = vpow.pop %v352
    %v354 = vmul.f32 %v351, 1.442695
    %v355 = vpow.pop %v354
    %v356 = vsel %vm154, %v353, 0.0
    %357 = vadd.xlane.f32.xlu0 %v356
    %v358 = vpop.xlane.xlu0 %357
    %v359 = vsel %vm154, %v355, 0.0
    %360 = vadd.xlane.f32.xlu0 %v359
    %v361 = vpop.xlane.xlu0 %360
    %v362 = vrcp.pop %v358
    %v363 = vrcp.pop %v361
    %v364 = vmul.f32 %v353, %v362
    %v365 = vmul.f32 %v355, %v363
    %v366 = vpack.c.bf16 %v365, %v364
    %367 = vrot.lane.b32.xlu0 %v126, 48
    %v368 = vpop.permute.xlu0 %367
    %v371 = vsel %vm154, %v366, 0
    %373 = vmatpush.bf16.msra.mxu0 0
    %374 = vmatpush.bf16.msra.mxu0 0
    %375 = vmatpush.bf16.msra.mxu0 0
    %376 = vmatpush.bf16.msra.mxu0 0
    %377 = vmatpush.bf16.msra.mxu0 0
    %378 = vmatpush.bf16.msra.mxu0 0
    %379 = vmatpush.bf16.msra.mxu0 0
    %380 = vmatpush.bf16.msra.mxu0 %v368
    %381 = vmatmul.bf16.gmra.mxu0 %v371
    %v382 = vpop.f32.mrf.mxu0
    %v383 = vadd.f32 0.0, %v382
    %v384 = vpop.f32.mrf.mxu0
    %v385 = vadd.f32 0.0, %v384
    %386 = vdwg.mxu0
    %v387 = vpack.c.bf16 %v385, %v383
    %v389 = vsel %vm129, %v387, 0
    %v392 = vsel %vm202, %v69, 0
    %394 = vmatpush.bf16.msra.mxu0 0
    %395 = vmatpush.bf16.msra.mxu0 0
    %396 = vmatpush.bf16.msra.mxu0 0
    %397 = vmatpush.bf16.msra.mxu0 0
    %398 = vmatpush.bf16.msra.mxu0 0
    %399 = vmatpush.bf16.msra.mxu0 0
    %400 = vmatpush.bf16.msra.mxu0 0
    %401 = vmatpush.bf16.msra.mxu0 %v392
    %402 = vmatmul.bf16.gmra.mxu0 %v389
    %v403 = vpop.f32.mrf.mxu0
    %v404 = vadd.f32 0.0, %v403
    %v405 = vpop.f32.mrf.mxu0
    %v406 = vadd.f32 0.0, %v405
    %407 = vdwg.mxu0
    %v408 = vadd.f32 %v314, %v404
    %v409 = vadd.f32 %v315, %v406
    %410 = vrot.lane.b32.xlu0 %v126, 104
    %v411 = vpop.permute.xlu0 %410
    %412 = vrot.lane.b32.xlu0 %v126, 72
    %v413 = vpop.permute.xlu0 %412
    %v415 = vsel %vm129, %v411, 0
    %v418 = vsel %vm129, %v413, 0
    %420 = vmatpush.bf16.xpose.msra.mxu0 0
    %421 = vmatpush.bf16.xpose.msra.mxu0 0
    %422 = vmatpush.bf16.xpose.msra.mxu0 0
    %423 = vmatpush.bf16.xpose.msra.mxu0 0
    %424 = vmatpush.bf16.xpose.msra.mxu0 0
    %425 = vmatpush.bf16.xpose.msra.mxu0 0
    %426 = vmatpush.bf16.xpose.msra.mxu0 0
    %427 = vmatpush.bf16.xpose.msra.mxu0 %v418
    %428 = vmatmul.bf16.gmra.mxu0 %v415
    %v429 = vpop.f32.mrf.mxu0
    %v430 = vadd.f32 0.0, %v429
    %v431 = vpop.f32.mrf.mxu0
    %v432 = vadd.f32 0.0, %v431
    %433 = vdwg.mxu0
    %v434 = vmul.f32 %v430, 0.35355338
    %v435 = vmul.f32 %v432, 0.35355338
    %v436 = vadd.f32 %v434, %v117
    %v437 = vadd.f32 %v435, %v118
    %v438 = vsel %vm154, %v436, -inf
    %439 = vmax.xlane.f32.xlu0 %v438
    %v440 = vpop.xlane.xlu0 %439
    %v441 = vsel %vm154, %v437, -inf
    %442 = vmax.xlane.f32.xlu0 %v441
    %v443 = vpop.xlane.xlu0 %442
    %v444 = vsub.f32 %v436, %v440
    %v445 = vsub.f32 %v437, %v443
    %v446 = vmul.f32 %v444, 1.442695
    %v447 = vpow.pop %v446
    %v448 = vmul.f32 %v445, 1.442695
    %v449 = vpow.pop %v448
    %v450 = vsel %vm154, %v447, 0.0
    %451 = vadd.xlane.f32.xlu0 %v450
    %v452 = vpop.xlane.xlu0 %451
    %v453 = vsel %vm154, %v449, 0.0
    %454 = vadd.xlane.f32.xlu0 %v453
    %v455 = vpop.xlane.xlu0 %454
    %v456 = vrcp.pop %v452
    %v457 = vrcp.pop %v455
    %v458 = vmul.f32 %v447, %v456
    %v459 = vmul.f32 %v449, %v457
    %v460 = vpack.c.bf16 %v459, %v458
    %461 = vrot.lane.b32.xlu0 %v126, 40
    %v462 = vpop.permute.xlu0 %461
    %v465 = vsel %vm154, %v460, 0
    %467 = vmatpush.bf16.msra.mxu0 0
    %468 = vmatpush.bf16.msra.mxu0 0
    %469 = vmatpush.bf16.msra.mxu0 0
    %470 = vmatpush.bf16.msra.mxu0 0
    %471 = vmatpush.bf16.msra.mxu0 0
    %472 = vmatpush.bf16.msra.mxu0 0
    %473 = vmatpush.bf16.msra.mxu0 0
    %474 = vmatpush.bf16.msra.mxu0 %v462
    %475 = vmatmul.bf16.gmra.mxu0 %v465
    %v476 = vpop.f32.mrf.mxu0
    %v477 = vadd.f32 0.0, %v476
    %v478 = vpop.f32.mrf.mxu0
    %v479 = vadd.f32 0.0, %v478
    %480 = vdwg.mxu0
    %v481 = vpack.c.bf16 %v479, %v477
    %v483 = vsel %vm129, %v481, 0
    %v486 = vsel %vm202, %v70, 0
    %488 = vmatpush.bf16.msra.mxu0 0
    %489 = vmatpush.bf16.msra.mxu0 0
    %490 = vmatpush.bf16.msra.mxu0 0
    %491 = vmatpush.bf16.msra.mxu0 0
    %492 = vmatpush.bf16.msra.mxu0 0
    %493 = vmatpush.bf16.msra.mxu0 0
    %494 = vmatpush.bf16.msra.mxu0 0
    %495 = vmatpush.bf16.msra.mxu0 %v486
    %496 = vmatmul.bf16.gmra.mxu0 %v483
    %v497 = vpop.f32.mrf.mxu0
    %v498 = vadd.f32 0.0, %v497
    %v499 = vpop.f32.mrf.mxu0
    %v500 = vadd.f32 0.0, %v499
    %501 = vdwg.mxu0
    %v502 = vadd.f32 %v408, %v498
    %v503 = vadd.f32 %v409, %v500
    %v504 = vsel %vm93, %v502, 0.0
    %505 = vadd.xlane.f32.xlu0 %v504
    %v506 = vpop.xlane.xlu0 %505
    %v507 = vsel %vm93, %v503, 0.0
    %508 = vadd.xlane.f32.xlu0 %v507
    %v509 = vpop.xlane.xlu0 %508
    %v510 = vrcp.pop 32.0
    %v511 = vmul.f32 32.0, %v510
    %v512 = vsub.f32 1.0, %v511
    %v513 = vmul.f32 %v510, %v512
    %v514 = vadd.f32 %v510, %v513
    %vm515 = vweird.f32 %v510
    %v516 = vsel %vm515, %v510, %v514
    %v517 = vmul.f32 %v506, %v516
    %v518 = vmul.f32 %v509, %v516
    %v519 = vsub.f32 %v502, %v517
    %v520 = vsub.f32 %v503, %v518
    %v521 = vmul.f32 %v519, %v519
    %v522 = vmul.f32 %v520, %v520
    %v523 = vsel %vm93, %v521, 0.0
    %524 = vadd.xlane.f32.xlu0 %v523
    %v525 = vpop.xlane.xlu0 %524
    %v526 = vsel %vm93, %v522, 0.0
    %527 = vadd.xlane.f32.xlu0 %v526
    %v528 = vpop.xlane.xlu0 %527
    %v529 = vmul.f32 %v525, %v516
    %v530 = vmul.f32 %v528, %v516
    %v531 = vadd.f32 %v529, 1e-12
    %v532 = vadd.f32 %v530, 1e-12
    %v533 = vrsqrt.pop %v531
    %v534 = vmul.f32 %v533, %v531
    %v535 = vmul.f32 %v534, %v533
    %v536 = vmul.f32 0.5, %v535
    %v537 = vsub.f32 1.5, %v536
    %v538 = vmul.f32 %v533, %v537
    %vm539 = vweird.f32 %v531
    %vm540 = vweird.f32 %v533
    %vm541 = vmor %vm539, %vm540
    %v542 = vsel %vm541, %v533, %v538
    %v543 = vrsqrt.pop %v532
    %v544 = vmul.f32 %v543, %v532
    %v545 = vmul.f32 %v544, %v543
    %v546 = vmul.f32 0.5, %v545
    %v547 = vsub.f32 1.5, %v546
    %v548 = vmul.f32 %v543, %v547
    %vm549 = vweird.f32 %v532
    %vm550 = vweird.f32 %v543
    %vm551 = vmor %vm549, %vm550
    %v552 = vsel %vm551, %v543, %v548
    %v553 = vmul.f32 %v519, %v542
    %v554 = vmul.f32 %v520, %v552
    %v555 = vperm.slane %v56, 4
    %v556 = vmul.f32 %v553, %v555
    %v557 = vmul.f32 %v554, %v555
    %v558 = vperm.slane %v56, 5
    %v559 = vadd.f32 %v556, %v558
    %v560 = vadd.f32 %v557, %v558
    %v561 = vpack.c.bf16 %v560, %v559
    %v562 = vperm.slane %v56, 2
    %v567 = vunpack.c.l.b16 %v63
    %v568 = vunpack.c.l.b16 %v64
    %v569 = vunpack.c.l.b16 %v65
    %v570 = vunpack.c.l.b16 %v66
    %v571 = vpack.c.b16 %v568, %v567
    %v572 = vpack.c.b16 %v570, %v569
    %v576 = vsel %vm93, %v561, 0
    %578 = vmatpush.bf16.msra.mxu0 0
    %579 = vmatpush.bf16.msra.mxu0 0
    %580 = vmatpush.bf16.msra.mxu0 0
    %581 = vmatpush.bf16.msra.mxu0 0
    %582 = vmatpush.bf16.msra.mxu0 0
    %583 = vmatpush.bf16.msra.mxu0 0
    %584 = vmatpush.bf16.msra.mxu0 %v572
    %585 = vmatpush.bf16.msra.mxu0 %v571
    %586 = vmatmul.bf16.gmra.mxu0 %v576
    %v587 = vpop.f32.mrf.mxu0
    %v588 = vadd.f32 %v562, %v587
    %v589 = vpop.f32.mrf.mxu0
    %v590 = vadd.f32 %v562, %v589
    %591 = vdwg.mxu0
    %v592 = vmul.f32 %v588, 0.5
    %v593 = vmul.f32 %v590, 0.5
    %v594 = vmul.f32 %v588, 0.70710677
    %v595 = vmul.f32 %v590, 0.70710677
    %v596 = vmul.f32 %v594, %v594
    %v597 = vmin.f32 16.0, %v596
    %v598 = vmul.f32 %v597, 2.1237322e-06
    %v599 = vadd.f32 %v598, 0.00028619796
    %v600 = vmul.f32 %v597, %v599
    %v601 = vadd.f32 %v600, 0.0036580483
    %v602 = vmul.f32 %v597, %v601
    %v603 = vadd.f32 %v602, 0.05243302
    %v604 = vmul.f32 %v597, %v603
    %v605 = vadd.f32 %v604, 0.18741608
    %v606 = vmul.f32 %v597, %v605
    %v607 = vadd.f32 %v606, 1.1283791
    %v608 = vmul.f32 %v594, %v607
    %v609 = vmul.f32 %v597, 3.8918573e-05
    %v610 = vadd.f32 %v609, 0.001143296
    %v611 = vmul.f32 %v597, %v610
    %v612 = vadd.f32 %v611, 0.014752088
    %v613 = vmul.f32 %v597, %v612
    %v614 = vadd.f32 %v613, 0.112945676
    %v615 = vmul.f32 %v597, %v614
    %v616 = vadd.f32 %v615, 0.4994258
    %v617 = vmul.f32 %v597, %v616
    %v618 = vadd.f32 %v617, 1.0
    %v619 = vrcp.pop %v618
    %v620 = vmul.f32 %v618, %v619
    %v621 = vsub.f32 1.0, %v620
    %v622 = vmul.f32 %v619, %v621
    %v623 = vadd.f32 %v619, %v622
    %vm624 = vweird.f32 %v618
    %vm625 = vweird.f32 %v619
    %vm626 = vmor %vm624, %vm625
    %v627 = vsel %vm626, %v619, %v623
    %v628 = vand.u32 2147483647, %v618
    %vm629 = vcmp.eq.f32.partialorder %v628, 8.507059e+37
    %v630 = vand.u32 %v618, 2147483648
    %v631 = vor.u32 1.1754944e-38, %v630
    %v632 = vsel %vm629, %v631, %v627
    %v633 = vmul.f32 %v608, %v632
    %v634 = vmin.f32 %v633, 1.0
    %v635 = vmax.f32 %v634, -1.0
    %v636 = vmul.f32 %v595, %v595
    %v637 = vmin.f32 16.0, %v636
    %v638 = vmul.f32 %v637, 2.1237322e-06
    %v639 = vadd.f32 %v638, 0.00028619796
    %v640 = vmul.f32 %v637, %v639
    %v641 = vadd.f32 %v640, 0.0036580483
    %v642 = vmul.f32 %v637, %v641
    %v643 = vadd.f32 %v642, 0.05243302
    %v644 = vmul.f32 %v637, %v643
    %v645 = vadd.f32 %v644, 0.18741608
    %v646 = vmul.f32 %v637, %v645
    %v647 = vadd.f32 %v646, 1.1283791
    %v648 = vmul.f32 %v595, %v647
    %v649 = vmul.f32 %v637, 3.8918573e-05
    %v650 = vadd.f32 %v649, 0.001143296
    %v651 = vmul.f32 %v637, %v650
    %v652 = vadd.f32 %v651, 0.014752088
    %v653 = vmul.f32 %v637, %v652
    %v654 = vadd.f32 %v653, 0.112945676
    %v655 = vmul.f32 %v637, %v654
    %v656 = vadd.f32 %v655, 0.4994258
    %v657 = vmul.f32 %v637, %v656
    %v658 = vadd.f32 %v657, 1.0
    %v659 = vrcp.pop %v658
    %v660 = vmul.f32 %v658, %v659
    %v661 = vsub.f32 1.0, %v660
    %v662 = vmul.f32 %v659, %v661
    %v663 = vadd.f32 %v659, %v662
    %vm664 = vweird.f32 %v658
    %vm665 = vweird.f32 %v659
    %vm666 = vmor %vm664, %vm665
    %v667 = vsel %vm666, %v659, %v663
    %v668 = vand.u32 2147483647, %v658
    %vm669 = vcmp.eq.f32.partialorder %v668, 8.507059e+37
    %v670 = vand.u32 %v658, 2147483648
    %v671 = vor.u32 1.1754944e-38, %v670
    %v672 = vsel %vm669, %v671, %v667
    %v673 = vmul.f32 %v648, %v672
    %v674 = vmin.f32 %v673, 1.0
    %v675 = vmax.f32 %v674, -1.0
    %v676 = vadd.f32 %v635, 1.0
    %v677 = vadd.f32 %v675, 1.0
    %v678 = vmul.f32 %v592, %v676
    %v679 = vmul.f32 %v593, %v677
    %v680 = vpack.c.bf16 %v679, %v678
    %v681 = vperm.slane %v56, 3
    %v690 = vunpack.c.l.b16 %v71
    %v691 = vunpack.c.l.b16 %v72
    %v692 = vunpack.c.l.b16 %v73
    %v693 = vunpack.c.l.b16 %v74
    %v694 = vunpack.c.l.b16 %v75
    %v695 = vunpack.c.l.b16 %v76
    %v696 = vunpack.c.l.b16 %v77
    %v697 = vunpack.c.l.b16 %v78
    %v698 = vpack.c.b16 %v691, %v690
    %v699 = vpack.c.b16 %v693, %v692
    %v700 = vpack.c.b16 %v695, %v694
    %v701 = vpack.c.b16 %v697, %v696
    %vm706 = vcmask 523264
    %v708 = vsel %vm706, %v680, 0
    %710 = vmatpush.bf16.msra.mxu0 0
    %711 = vmatpush.bf16.msra.mxu0 0
    %712 = vmatpush.bf16.msra.mxu0 0
    %713 = vmatpush.bf16.msra.mxu0 0
    %714 = vmatpush.bf16.msra.mxu0 %v701
    %715 = vmatpush.bf16.msra.mxu0 %v700
    %716 = vmatpush.bf16.msra.mxu0 %v699
    %717 = vmatpush.bf16.msra.mxu0 %v698
    %718 = vmatmul.bf16.gmra.mxu0 %v708
    %v719 = vpop.f32.mrf.mxu0
    %v720 = vadd.f32 %v681, %v719
    %v721 = vpop.f32.mrf.mxu0
    %v722 = vadd.f32 %v681, %v721
    %723 = vdwg.mxu0
    %v724 = vadd.f32 %v720, %v559
    %v725 = vadd.f32 %v722, %v560
    %v726 = vsel %vm93, %v724, 0.0
    %727 = vadd.xlane.f32.xlu0 %v726
    %v728 = vpop.xlane.xlu0 %727
    %v729 = vsel %vm93, %v725, 0.0
    %730 = vadd.xlane.f32.xlu0 %v729
    %v731 = vpop.xlane.xlu0 %730
    %v732 = vmul.f32 %v728, %v516
    %v733 = vmul.f32 %v731, %v516
    %v734 = vsub.f32 %v724, %v732
    %v735 = vsub.f32 %v725, %v733
    %v736 = vmul.f32 %v734, %v734
    %v737 = vmul.f32 %v735, %v735
    %v738 = vsel %vm93, %v736, 0.0
    %739 = vadd.xlane.f32.xlu0 %v738
    %v740 = vpop.xlane.xlu0 %739
    %v741 = vsel %vm93, %v737, 0.0
    %742 = vadd.xlane.f32.xlu0 %v741
    %v743 = vpop.xlane.xlu0 %742
    %v744 = vmul.f32 %v740, %v516
    %v745 = vmul.f32 %v743, %v516
    %v746 = vadd.f32 %v744, 1e-12
    %v747 = vadd.f32 %v745, 1e-12
    %v748 = vrsqrt.pop %v746
    %v749 = vmul.f32 %v748, %v746
    %v750 = vmul.f32 %v749, %v748
    %v751 = vmul.f32 0.5, %v750
    %v752 = vsub.f32 1.5, %v751
    %v753 = vmul.f32 %v748, %v752
    %vm754 = vweird.f32 %v746
    %vm755 = vweird.f32 %v748
    %vm756 = vmor %vm754, %vm755
    %v757 = vsel %vm756, %v748, %v753
    %v758 = vrsqrt.pop %v747
    %v759 = vmul.f32 %v758, %v747
    %v760 = vmul.f32 %v759, %v758
    %v761 = vmul.f32 0.5, %v760
    %v762 = vsub.f32 1.5, %v761
    %v763 = vmul.f32 %v758, %v762
    %vm764 = vweird.f32 %v747
    %vm765 = vweird.f32 %v758
    %vm766 = vmor %vm764, %vm765
    %v767 = vsel %vm766, %v758, %v763
    %v768 = vmul.f32 %v734, %v757
    %v769 = vmul.f32 %v735, %v767
    %v770 = vperm.slane %v56, 6
    %v771 = vmul.f32 %v768, %v770
    %v772 = vmul.f32 %v769, %v770
    %v773 = vperm.slane %v56, 7
    %v774 = vadd.f32 %v771, %v773
    %v775 = vadd.f32 %v772, %v773
    %776 = vst.msk [vmem:[#allocation7] sm:$0xff] %vm93, %v774
    %777 = vst.msk [vmem:[#allocation7 + $0x8] sm:$0xff] %vm93, %v775
    // Predicated region
    $region30: #{bert_layer.1} parent=1 // pred_check
      _
    $region31: #{bert_layer.1} parent=1 // pred_check_branch
      %779 = sbr.rel (0) target = $region33
    $region32: #{bert_layer.1} parent=1 // pred_region
      %781 = vsyncadd [#allocation4], 0
      %s782 = sshll.u32 [#allocation7], 4
      %s783 = int_to_ptr.vmem [resolvable:$true] %s782
      %s784 = sshll.u32 %s5, 4
      %s785 = int_to_ptr.hbm [resolvable:$true] %s784
      %790 = dma.vmem_to_hbm [thread:$0]  %s783, 256, %s785, [#allocation4], 128, 128, 8
    $region33: #{bert_layer.1} parent=1 // pred_fallthru
      _
    // Predicated region
    $region34: #{bert_layer.1} parent=1 // pred_check
      _
    $region35: #{bert_layer.1} parent=1 // pred_check_branch
      %792 = sbr.rel (0) target = $region37
    $region36: #{bert_layer.1} parent=1 // pred_region
      %794 = dma.done [#allocation4], 256
    $region37: #{bert_layer.1} parent=1 // pred_fallthru
      _
    %795 = vsyncpa [#allocation3], 1
    %796 = vsyncpa [#allocation6], 1
    %797 = vsyncpa [#allocation4], 1

</llo_original>
